<compile_context>
chip_gen: v6e
topology: v6e:2x2x1
jax: 0.10.0
libtpu: 0.0.40
codegen_flags: <defaults>
</compile_context>

<pallas_src>
import jax
import jax.numpy as jnp
import numpy as np
from jax import lax
from jax.experimental import pallas as pl
from jax.experimental.pallas import tpu as pltpu


def _lista_kernel(theta_ref, by_ref, w_ref, x0_ref, out_ref):
    """Entire LISTA recursion:  xh <- shrink(xh @ W + By, theta[t]),  t=0..T-1.

    theta_ref : SMEM [T] f32          per-layer thresholds
    by_ref    : VMEM [Bp, Np] f32     By = y @ B_   (layer invariant)
    w_ref     : VMEM [Np, Np] f32/bf16
    x0_ref    : VMEM [Bp, Np] f32     initial estimate
    out_ref   : VMEM [T+1, Bp, Np] f32  stacked iterates (row 0 is x0)
    """
    n_layers = theta_ref.shape[0]
    by = by_ref[...]
    xh = x0_ref[...].astype(jnp.float32)
    out_ref[0] = xh.astype(out_ref.dtype)

    # Statically unrolled recurrence (T is a compile-time constant and small).
    for t in range(n_layers):
        z = jnp.dot(
            xh.astype(w_ref.dtype), w_ref[...],
            preferred_element_type=jnp.float32,
        ) + by
        theta = jnp.maximum(theta_ref[t], jnp.float32(0.0))
        # Soft threshold: identical to sign(z)*max(|z|-theta, 0) for theta>=0.
        xh = z - jnp.clip(z, -theta, theta)
        out_ref[t + 1] = xh.astype(out_ref.dtype)


def lista_forward(y, B_w, W_w, thetas, x0=None, *, weight_dtype=jnp.bfloat16):
    """Returns the stacked LISTA iterates [T+1, B, N] (row 0 is x0).

    Semantics match LISTA.forward (which returns the list [x0, xh_1, ..., xh_T]).
    """
    Bsz, M = y.shape
    N = B_w.shape[1]
    T = int(thetas.shape[0])

    if x0 is None:
        x0 = jnp.zeros((Bsz, N), jnp.float32)

    # Layer-invariant term, computed once outside the recurrent kernel
    # (full f32 precision so the f32 path matches the reference tightly).
    By = jnp.dot(y.astype(jnp.float32), B_w.astype(jnp.float32),
                 precision=lax.Precision.HIGHEST)

    # Pad: lanes (last dim) to multiples of 128, batch (sublane) to multiples
    # of 8.  For real workloads, co-batch / pad Bsz up to >=128 rows so the
    # xh @ W matmul presents full rows to the MXU.
    LANE, SUB = 128, 8
    N_pad = ((N + LANE - 1) // LANE) * LANE
    B_pad = ((Bsz + SUB - 1) // SUB) * SUB

    By_p = jnp.zeros((B_pad, N_pad), jnp.float32).at[:Bsz, :N].set(By)
    x0_p = jnp.zeros((B_pad, N_pad), jnp.float32).at[:Bsz, :N].set(
        x0.astype(jnp.float32))
    W_p = jnp.zeros((N_pad, N_pad), jnp.float32).at[:N, :N].set(
        W_w.astype(jnp.float32)).astype(weight_dtype)

    out = pl.pallas_call(
        _lista_kernel,
        out_shape=jax.ShapeDtypeStruct((T + 1, B_pad, N_pad), jnp.float32),
        in_specs=[
            pl.BlockSpec(memory_space=pltpu.MemorySpace.SMEM),   # thetas [T]
            pl.BlockSpec(memory_space=pltpu.MemorySpace.VMEM),   # By
            pl.BlockSpec(memory_space=pltpu.MemorySpace.VMEM),   # W
            pl.BlockSpec(memory_space=pltpu.MemorySpace.VMEM),   # x0
        ],
        out_specs=pl.BlockSpec(memory_space=pltpu.MemorySpace.VMEM),
    )(thetas.astype(jnp.float32), By_p, W_p, x0_p)

    # Strip padding; return a single stacked device array.
    return out[:, :Bsz, :N]


def make_lista_params(A, T, lam):
    """Deterministic parameter setup mirroring LISTA.setup_layers (tied weights)."""
    A = A.astype(jnp.float32)
    M, N = A.shape
    # torch.norm(A, p=2) with dim=None flattens -> Frobenius norm.
    scale = 1.001 * jnp.sum(A * A)
    B = A.T / scale                              # [N, M]
    W = jnp.eye(N, dtype=jnp.float32) - B @ A    # [N, N]
    B_w = B.T                                    # [M, N]  (transposed back, as in setup_layers)
    W_w = W.T                                    # [N, N]
    theta0 = lam / scale
    thetas = jnp.full((T,), theta0, dtype=jnp.float32)
    return B_w, W_w, thetas


def _round_like(a, weight_dtype):
    if weight_dtype == jnp.bfloat16:
        return np.asarray(
            jnp.asarray(a, jnp.float32).astype(jnp.bfloat16).astype(jnp.float32))
    return np.asarray(a, np.float32)


def lista_reference(y, B_w, W_w, thetas, x0=None, weight_dtype=jnp.float32):
    """NumPy reference of the PyTorch forward (mimicking the kernel's weight dtype)."""
    y = np.asarray(y, np.float32)
    B_np = np.asarray(B_w, np.float32)
    W_np = np.asarray(W_w, np.float32)
    th = np.asarray(thetas, np.float32)
    Bsz = y.shape[0]
    N = B_np.shape[1]
    xh = (np.zeros((Bsz, N), np.float32) if x0 is None
          else np.asarray(x0, np.float32))
    W_eff = _round_like(W_np, weight_dtype)
    By = y @ B_np
    xhs = [xh]
    for t in range(th.shape[0]):
        theta = max(float(th[t]), 0.0)
        z = _round_like(xh, weight_dtype) @ W_eff + By
        xh = (np.sign(z) * np.maximum(np.abs(z) - theta, 0.0)).astype(np.float32)
        xhs.append(xh)
    return np.stack(xhs, axis=0)


if __name__ == "__main__":
    # Small, forward-consistent shapes: A is [M, N], y is [batch, M].
    M, N = 16, 32
    T = 5
    lam = 0.1
    batch = 8

    key = jax.random.PRNGKey(0)
    k_a, k_y = jax.random.split(key)
    A = jax.random.normal(k_a, (M, N), dtype=jnp.float32) / jnp.sqrt(M)
    y = jax.random.normal(k_y, (batch, M), dtype=jnp.float32)

    B_w, W_w, thetas = make_lista_params(A, T, lam)

    # 1) f32 weights: faithful to the PyTorch module's numerics.
    xhs_f32 = jax.block_until_ready(
        lista_forward(y, B_w, W_w, thetas, weight_dtype=jnp.float32))
    ref_f32 = lista_reference(y, B_w, W_w, thetas, weight_dtype=jnp.float32)
    np.testing.assert_allclose(np.asarray(xhs_f32), ref_f32, rtol=1e-4, atol=1e-4)

    # 2) bf16 weights (recommended perf config): MXU-native input, f32 accumulation.
    xhs_bf16 = jax.block_until_ready(
        lista_forward(y, B_w, W_w, thetas, weight_dtype=jnp.bfloat16))
    ref_bf16 = lista_reference(y, B_w, W_w, thetas, weight_dtype=jnp.bfloat16)
    np.testing.assert_allclose(np.asarray(xhs_bf16), ref_bf16, rtol=1e-3, atol=1e-3)

    print("KERNEL_OK")
</pallas_src>

<mosaic_0001>
module attributes {stable_mosaic.version = 11 : i64} {
  func.func @_lista_kernel(%arg0: memref<5xf32, #tpu.memory_space<smem>>, %arg1: memref<8x128xf32, #tpu.memory_space<vmem>>, %arg2: memref<128x128xf32, #tpu.memory_space<vmem>>, %arg3: memref<8x128xf32, #tpu.memory_space<vmem>>, %arg4: memref<6x8x128xf32, #tpu.memory_space<vmem>>) attributes {dimension_semantics = [], scalar_prefetch = 0 : i64, scratch_operands = 0 : i64, tpu.core_type = #tpu.core_type<tc>} {
    %c0 = arith.constant 0 : index
    %c0_0 = arith.constant 0 : index
    %0 = vector.load %arg1[%c0, %c0_0] : memref<8x128xf32, #tpu.memory_space<vmem>>, vector<8x128xf32>
    %c0_1 = arith.constant 0 : index
    %c0_2 = arith.constant 0 : index
    %1 = vector.load %arg3[%c0_1, %c0_2] : memref<8x128xf32, #tpu.memory_space<vmem>>, vector<8x128xf32>
    %c0_3 = arith.constant 0 : index
    %c0_4 = arith.constant 0 : index
    %c0_5 = arith.constant 0 : index
    %2 = vector.load %arg4[%c0_3, %c0_4, %c0_5] : memref<6x8x128xf32, #tpu.memory_space<vmem>>, vector<1x8x128xf32>
    %3 = vector.shape_cast %2 : vector<1x8x128xf32> to vector<8x128xf32>
    %4 = vector.shape_cast %1 : vector<8x128xf32> to vector<1x8x128xf32>
    tpu.vector_store %arg4[%c0_3, %c0_4, %c0_5], %4 {strides = array<i32>} : memref<6x8x128xf32, #tpu.memory_space<vmem>>, vector<1x8x128xf32>,
    %c0_6 = arith.constant 0 : index
    %c0_7 = arith.constant 0 : index
    %5 = vector.load %arg2[%c0_6, %c0_7] : memref<128x128xf32, #tpu.memory_space<vmem>>, vector<128x128xf32>
    %cst = arith.constant dense<0.000000e+00> : vector<8x128xf32>
    %6 = tpu.matmul %1, %5, %cst {dimension_numbers = #tpu.dot_dimension_numbers<[1], [0], [0], [1], [0, 0, 1, 1], [], []>} : vector<8x128xf32>, vector<128x128xf32>, vector<8x128xf32> -> vector<8x128xf32>
    %7 = arith.addf %6, %0 : vector<8x128xf32>
    %c0_8 = arith.constant 0 : index
    %8 = memref.load %arg0[%c0_8] : memref<5xf32, #tpu.memory_space<smem>>
    %cst_9 = arith.constant 0.000000e+00 : f32
    %9 = arith.maximumf %8, %cst_9 : f32
    %cst_10 = arith.constant 0.000000e+00 : f32
    %10 = arith.subf %cst_10, %9 : f32
    %11 = vector.broadcast %10 : f32 to vector<8x128xf32>
    %12 = arith.maximumf %11, %7 : vector<8x128xf32>
    %13 = vector.broadcast %9 : f32 to vector<8x128xf32>
    %14 = arith.minimumf %13, %12 : vector<8x128xf32>
    %15 = arith.subf %7, %14 : vector<8x128xf32>
    %c1 = arith.constant 1 : index
    %c0_11 = arith.constant 0 : index
    %c0_12 = arith.constant 0 : index
    %16 = vector.load %arg4[%c1, %c0_11, %c0_12] : memref<6x8x128xf32, #tpu.memory_space<vmem>>, vector<1x8x128xf32>
    %17 = vector.shape_cast %16 : vector<1x8x128xf32> to vector<8x128xf32>
    %18 = vector.shape_cast %15 : vector<8x128xf32> to vector<1x8x128xf32>
    tpu.vector_store %arg4[%c1, %c0_11, %c0_12], %18 {strides = array<i32>} : memref<6x8x128xf32, #tpu.memory_space<vmem>>, vector<1x8x128xf32>,
    %c0_13 = arith.constant 0 : index
    %c0_14 = arith.constant 0 : index
    %19 = vector.load %arg2[%c0_13, %c0_14] : memref<128x128xf32, #tpu.memory_space<vmem>>, vector<128x128xf32>
    %cst_15 = arith.constant dense<0.000000e+00> : vector<8x128xf32>
    %20 = tpu.matmul %15, %19, %cst_15 {dimension_numbers = #tpu.dot_dimension_numbers<[1], [0], [0], [1], [0, 0, 1, 1], [], []>} : vector<8x128xf32>, vector<128x128xf32>, vector<8x128xf32> -> vector<8x128xf32>
    %21 = arith.addf %20, %0 : vector<8x128xf32>
    %c1_16 = arith.constant 1 : index
    %22 = memref.load %arg0[%c1_16] : memref<5xf32, #tpu.memory_space<smem>>
    %cst_17 = arith.constant 0.000000e+00 : f32
    %23 = arith.maximumf %22, %cst_17 : f32
    %cst_18 = arith.constant 0.000000e+00 : f32
    %24 = arith.subf %cst_18, %23 : f32
    %25 = vector.broadcast %24 : f32 to vector<8x128xf32>
    %26 = arith.maximumf %25, %21 : vector<8x128xf32>
    %27 = vector.broadcast %23 : f32 to vector<8x128xf32>
    %28 = arith.minimumf %27, %26 : vector<8x128xf32>
    %29 = arith.subf %21, %28 : vector<8x128xf32>
    %c2 = arith.constant 2 : index
    %c0_19 = arith.constant 0 : index
    %c0_20 = arith.constant 0 : index
    %30 = vector.load %arg4[%c2, %c0_19, %c0_20] : memref<6x8x128xf32, #tpu.memory_space<vmem>>, vector<1x8x128xf32>
    %31 = vector.shape_cast %30 : vector<1x8x128xf32> to vector<8x128xf32>
    %32 = vector.shape_cast %29 : vector<8x128xf32> to vector<1x8x128xf32>
    tpu.vector_store %arg4[%c2, %c0_19, %c0_20], %32 {strides = array<i32>} : memref<6x8x128xf32, #tpu.memory_space<vmem>>, vector<1x8x128xf32>,
    %c0_21 = arith.constant 0 : index
    %c0_22 = arith.constant 0 : index
    %33 = vector.load %arg2[%c0_21, %c0_22] : memref<128x128xf32, #tpu.memory_space<vmem>>, vector<128x128xf32>
    %cst_23 = arith.constant dense<0.000000e+00> : vector<8x128xf32>
    %34 = tpu.matmul %29, %33, %cst_23 {dimension_numbers = #tpu.dot_dimension_numbers<[1], [0], [0], [1], [0, 0, 1, 1], [], []>} : vector<8x128xf32>, vector<128x128xf32>, vector<8x128xf32> -> vector<8x128xf32>
    %35 = arith.addf %34, %0 : vector<8x128xf32>
    %c2_24 = arith.constant 2 : index
    %36 = memref.load %arg0[%c2_24] : memref<5xf32, #tpu.memory_space<smem>>
    %cst_25 = arith.constant 0.000000e+00 : f32
    %37 = arith.maximumf %36, %cst_25 : f32
    %cst_26 = arith.constant 0.000000e+00 : f32
    %38 = arith.subf %cst_26, %37 : f32
    %39 = vector.broadcast %38 : f32 to vector<8x128xf32>
    %40 = arith.maximumf %39, %35 : vector<8x128xf32>
    %41 = vector.broadcast %37 : f32 to vector<8x128xf32>
    %42 = arith.minimumf %41, %40 : vector<8x128xf32>
    %43 = arith.subf %35, %42 : vector<8x128xf32>
    %c3 = arith.constant 3 : index
    %c0_27 = arith.constant 0 : index
    %c0_28 = arith.constant 0 : index
    %44 = vector.load %arg4[%c3, %c0_27, %c0_28] : memref<6x8x128xf32, #tpu.memory_space<vmem>>, vector<1x8x128xf32>
    %45 = vector.shape_cast %44 : vector<1x8x128xf32> to vector<8x128xf32>
    %46 = vector.shape_cast %43 : vector<8x128xf32> to vector<1x8x128xf32>
    tpu.vector_store %arg4[%c3, %c0_27, %c0_28], %46 {strides = array<i32>} : memref<6x8x128xf32, #tpu.memory_space<vmem>>, vector<1x8x128xf32>,
    %c0_29 = arith.constant 0 : index
    %c0_30 = arith.constant 0 : index
    %47 = vector.load %arg2[%c0_29, %c0_30] : memref<128x128xf32, #tpu.memory_space<vmem>>, vector<128x128xf32>
    %cst_31 = arith.constant dense<0.000000e+00> : vector<8x128xf32>
    %48 = tpu.matmul %43, %47, %cst_31 {dimension_numbers = #tpu.dot_dimension_numbers<[1], [0], [0], [1], [0, 0, 1, 1], [], []>} : vector<8x128xf32>, vector<128x128xf32>, vector<8x128xf32> -> vector<8x128xf32>
    %49 = arith.addf %48, %0 : vector<8x128xf32>
    %c3_32 = arith.constant 3 : index
    %50 = memref.load %arg0[%c3_32] : memref<5xf32, #tpu.memory_space<smem>>
    %cst_33 = arith.constant 0.000000e+00 : f32
    %51 = arith.maximumf %50, %cst_33 : f32
    %cst_34 = arith.constant 0.000000e+00 : f32
    %52 = arith.subf %cst_34, %51 : f32
    %53 = vector.broadcast %52 : f32 to vector<8x128xf32>
    %54 = arith.maximumf %53, %49 : vector<8x128xf32>
    %55 = vector.broadcast %51 : f32 to vector<8x128xf32>
    %56 = arith.minimumf %55, %54 : vector<8x128xf32>
    %57 = arith.subf %49, %56 : vector<8x128xf32>
    %c4 = arith.constant 4 : index
    %c0_35 = arith.constant 0 : index
    %c0_36 = arith.constant 0 : index
    %58 = vector.load %arg4[%c4, %c0_35, %c0_36] : memref<6x8x128xf32, #tpu.memory_space<vmem>>, vector<1x8x128xf32>
    %59 = vector.shape_cast %58 : vector<1x8x128xf32> to vector<8x128xf32>
    %60 = vector.shape_cast %57 : vector<8x128xf32> to vector<1x8x128xf32>
    tpu.vector_store %arg4[%c4, %c0_35, %c0_36], %60 {strides = array<i32>} : memref<6x8x128xf32, #tpu.memory_space<vmem>>, vector<1x8x128xf32>,
    %c0_37 = arith.constant 0 : index
    %c0_38 = arith.constant 0 : index
    %61 = vector.load %arg2[%c0_37, %c0_38] : memref<128x128xf32, #tpu.memory_space<vmem>>, vector<128x128xf32>
    %cst_39 = arith.constant dense<0.000000e+00> : vector<8x128xf32>
    %62 = tpu.matmul %57, %61, %cst_39 {dimension_numbers = #tpu.dot_dimension_numbers<[1], [0], [0], [1], [0, 0, 1, 1], [], []>} : vector<8x128xf32>, vector<128x128xf32>, vector<8x128xf32> -> vector<8x128xf32>
    %63 = arith.addf %62, %0 : vector<8x128xf32>
    %c4_40 = arith.constant 4 : index
    %64 = memref.load %arg0[%c4_40] : memref<5xf32, #tpu.memory_space<smem>>
    %cst_41 = arith.constant 0.000000e+00 : f32
    %65 = arith.maximumf %64, %cst_41 : f32
    %cst_42 = arith.constant 0.000000e+00 : f32
    %66 = arith.subf %cst_42, %65 : f32
    %67 = vector.broadcast %66 : f32 to vector<8x128xf32>
    %68 = arith.maximumf %67, %63 : vector<8x128xf32>
    %69 = vector.broadcast %65 : f32 to vector<8x128xf32>
    %70 = arith.minimumf %69, %68 : vector<8x128xf32>
    %71 = arith.subf %63, %70 : vector<8x128xf32>
    %c5 = arith.constant 5 : index
    %c0_43 = arith.constant 0 : index
    %c0_44 = arith.constant 0 : index
    %72 = vector.load %arg4[%c5, %c0_43, %c0_44] : memref<6x8x128xf32, #tpu.memory_space<vmem>>, vector<1x8x128xf32>
    %73 = vector.shape_cast %72 : vector<1x8x128xf32> to vector<8x128xf32>
    %74 = vector.shape_cast %71 : vector<8x128xf32> to vector<1x8x128xf32>
    tpu.vector_store %arg4[%c5, %c0_43, %c0_44], %74 {strides = array<i32>} : memref<6x8x128xf32, #tpu.memory_space<vmem>>, vector<1x8x128xf32>,
    return
  }
}

</mosaic_0001>

<llo_original>
// kernel: tpu_custom_call.1
$region0: #{tpu_custom_call.1}
  #allocation0 [shape = 'u32[]', space=smem, size = 0x4, offset = 0x4, fixed_abs, tag = 'smem constant byte address 0x4 - core index']
  #allocation1 [shape = 'u32[144,128]{1,0:T(1,128)}', space=vmem, size = 0x12000, scoped, tag = 'internal scratch']
  %s0 = inlined_call_operand.hbm [shape: f32[5], index: 0, kind: input, shape index: {}]
  %s1 = inlined_call_operand.hbm [shape: f32[8,128], index: 1, kind: input, shape index: {}]
  %s2 = inlined_call_operand.hbm [shape: f32[128,128], index: 2, kind: input, shape index: {}]
  %s3 = inlined_call_operand.hbm [shape: f32[8,128], index: 3, kind: input, shape index: {}]
  %s4 = inlined_call_operand.hbm [shape: f32[6,8,128], index: 4, kind: output, shape index: {}]
  %s5 = sld [smem:[#allocation0]]
  $region42: #{tpu_custom_call.1} parent=0
    _
  %s7 = ssub.s32 1, %s5
  %s8 = scalar_select 0, %s7, %s5
  $region1: #{tpu_custom_call.1} parent=0
    #allocation2 [shape = 'u8[512]{0}', space=smem, size = 0x200, scoped, tag = 'input window, operand 0, single buffered']
    #allocation3 [shape = 's32[1]{0}', space=sflag, size = 0x4, scoped, tag = 'scoped memory for tpu_custom_call.1']
    #allocation4 [shape = 's32[1]{0}', space=sflag, size = 0x4, scoped, tag = 'scoped memory for tpu_custom_call.1']
    #allocation5 [shape = 's32[1]{0}', space=sflag, size = 0x4, scoped, tag = 'scoped memory for tpu_custom_call.1']
    #allocation6 [shape = 'u8[4096]{0}', space=vmem, size = 0x1000, scoped, tag = 'input window, operand 1, single buffered']
    #allocation7 [shape = 'u8[65536]{0}', space=vmem, size = 0x10000, scoped, tag = 'input window, operand 2, single buffered']
    #allocation8 [shape = 's32[1]{0}', space=sflag, size = 0x4, scoped, tag = 'scoped memory for tpu_custom_call.1']
    #allocation9 [shape = 'u8[4096]{0}', space=vmem, size = 0x1000, scoped, tag = 'input window, operand 3, single buffered']
    #allocation10 [shape = 'u8[24576]{0}', space=vmem, size = 0x6000, scoped, tag = 'output window, operand 0, single buffered']
    %9 = vsyncpa [#allocation5], 0
    %10 = vsyncpa [#allocation3], 0
    %11 = vsyncpa [#allocation8], 0
    %12 = vsyncpa [#allocation4], 0
    // Predicated region
    $region2: #{tpu_custom_call.1} parent=1 // pred_check
      _
    $region3: #{tpu_custom_call.1} parent=1 // pred_check_branch
      %14 = sbr.rel (0) target = $region5
    $region4: #{tpu_custom_call.1} parent=1 // pred_region
      %s16 = ssub.s32 16, 16
      %17 = vsyncadd [#allocation5], %s16
      %20 = dma.hbm_to_smem %s0, 16, [#allocation2], [#allocation5]
    $region5: #{tpu_custom_call.1} parent=1 // pred_fallthru
      _
    // Predicated region
    $region6: #{tpu_custom_call.1} parent=1 // pred_check
      _
    $region7: #{tpu_custom_call.1} parent=1 // pred_check_branch
      %22 = sbr.rel (0) target = $region9
    $region8: #{tpu_custom_call.1} parent=1 // pred_region
      %s24 = ssub.s32 128, 128
      %25 = vsyncadd [#allocation3], %s24
      %s27 = sshll.u32 [#allocation6], 4
      %s28 = int_to_ptr.vmem [resolvable:$true] %s27
      %30 = dma.hbm_to_vmem [thread:$0]  %s1, 128, %s28, [#allocation3]
    $region9: #{tpu_custom_call.1} parent=1 // pred_fallthru
      _
    // Predicated region
    $region10: #{tpu_custom_call.1} parent=1 // pred_check
      _
    $region11: #{tpu_custom_call.1} parent=1 // pred_check_branch
      %32 = sbr.rel (0) target = $region13
    $region12: #{tpu_custom_call.1} parent=1 // pred_region
      %s34 = ssub.s32 2048, 2048
      %35 = vsyncadd [#allocation8], %s34
      %s36 = sshll.u32 [#allocation7], 4
      %s37 = int_to_ptr.vmem [resolvable:$true] %s36
      %42 = dma.hbm_to_vmem [thread:$0]  %s2, 2048, %s37, [#allocation8], 128, 128, 8
    $region13: #{tpu_custom_call.1} parent=1 // pred_fallthru
      _
    // Predicated region
    $region14: #{tpu_custom_call.1} parent=1 // pred_check
      _
    $region15: #{tpu_custom_call.1} parent=1 // pred_check_branch
      %44 = sbr.rel (0) target = $region17
    $region16: #{tpu_custom_call.1} parent=1 // pred_region
      %s46 = ssub.s32 128, 128
      %47 = vsyncadd [#allocation8], %s46
      %s49 = sshll.u32 [#allocation9], 4
      %s50 = int_to_ptr.vmem [resolvable:$true] %s49
      %52 = dma.hbm_to_vmem [thread:$0]  %s3, 128, %s50, [#allocation8]
    $region17: #{tpu_custom_call.1} parent=1 // pred_fallthru
      _
    // Predicated region
    $region18: #{tpu_custom_call.1} parent=1 // pred_check
      _
    $region19: #{tpu_custom_call.1} parent=1 // pred_check_branch
      %54 = sbr.rel (0) target = $region21
    $region20: #{tpu_custom_call.1} parent=1 // pred_region
      %55 = dma.done [#allocation5], 16
    $region21: #{tpu_custom_call.1} parent=1 // pred_fallthru
      _
    // Predicated region
    $region22: #{tpu_custom_call.1} parent=1 // pred_check
      _
    $region23: #{tpu_custom_call.1} parent=1 // pred_check_branch
      %57 = sbr.rel (0) target = $region25
    $region24: #{tpu_custom_call.1} parent=1 // pred_region
      %58 = dma.done [#allocation3], 128
    $region25: #{tpu_custom_call.1} parent=1 // pred_fallthru
      _
    // Predicated region
    $region26: #{tpu_custom_call.1} parent=1 // pred_check
      _
    $region27: #{tpu_custom_call.1} parent=1 // pred_check_branch
      %60 = sbr.rel (0) target = $region29
    $region28: #{tpu_custom_call.1} parent=1 // pred_region
      %61 = dma.done [#allocation8], 2048
    $region29: #{tpu_custom_call.1} parent=1 // pred_fallthru
      _
    // Predicated region
    $region30: #{tpu_custom_call.1} parent=1 // pred_check
      _
    $region31: #{tpu_custom_call.1} parent=1 // pred_check_branch
      %63 = sbr.rel (0) target = $region33
    $region32: #{tpu_custom_call.1} parent=1 // pred_region
      %64 = dma.done [#allocation8], 128
    $region33: #{tpu_custom_call.1} parent=1 // pred_fallthru
      _
    %65 = sfence
    %v66 = vld [vmem:[#allocation6] sm:$0xff]
    %v67 = vld [vmem:[#allocation9] sm:$0xff]
    %68 = vst [vmem:[#allocation10] sm:$0xff] %v67
    %v69 = vld [vmem:[#allocation7] sm:$0xff]
    %v70 = vld [vmem:[#allocation7 + $0x8] sm:$0xff]
    %v71 = vld [vmem:[#allocation7 + $0x10] sm:$0xff]
    %v72 = vld [vmem:[#allocation7 + $0x18] sm:$0xff]
    %v73 = vld [vmem:[#allocation7 + $0x20] sm:$0xff]
    %v74 = vld [vmem:[#allocation7 + $0x28] sm:$0xff]
    %v75 = vld [vmem:[#allocation7 + $0x30] sm:$0xff]
    %v76 = vld [vmem:[#allocation7 + $0x38] sm:$0xff]
    %v77 = vld [vmem:[#allocation7 + $0x40] sm:$0xff]
    %v78 = vld [vmem:[#allocation7 + $0x48] sm:$0xff]
    %v79 = vld [vmem:[#allocation7 + $0x50] sm:$0xff]
    %v80 = vld [vmem:[#allocation7 + $0x58] sm:$0xff]
    %v81 = vld [vmem:[#allocation7 + $0x60] sm:$0xff]
    %v82 = vld [vmem:[#allocation7 + $0x68] sm:$0xff]
    %v83 = vld [vmem:[#allocation7 + $0x70] sm:$0xff]
    %v84 = vld [vmem:[#allocation7 + $0x78] sm:$0xff]
    %85 = vmatprep.subr.mxu0 0.0
    %86 = vmatpush1.msra.mxu0 %v84
    %87 = vmatprep.subr.mxu0 0.0
    %88 = vmatpush1.msra.mxu0 %v83
    %89 = vmatprep.subr.mxu0 0.0
    %90 = vmatpush1.msra.mxu0 %v82
    %91 = vmatprep.subr.mxu0 0.0
    %92 = vmatpush1.msra.mxu0 %v81
    %93 = vmatprep.subr.mxu0 0.0
    %94 = vmatpush1.msra.mxu0 %v80
    %95 = vmatprep.subr.mxu0 0.0
    %96 = vmatpush1.msra.mxu0 %v79
    %97 = vmatprep.subr.mxu0 0.0
    %98 = vmatpush1.msra.mxu0 %v78
    %99 = vmatprep.subr.mxu0 0.0
    %100 = vmatpush1.msra.mxu0 %v77
    %101 = vmatprep.subr.mxu0 0.0
    %102 = vmatpush1.msra.mxu0 %v76
    %103 = vmatprep.subr.mxu0 0.0
    %104 = vmatpush1.msra.mxu0 %v75
    %105 = vmatprep.subr.mxu0 0.0
    %106 = vmatpush1.msra.mxu0 %v74
    %107 = vmatprep.subr.mxu0 0.0
    %108 = vmatpush1.msra.mxu0 %v73
    %109 = vmatprep.subr.mxu0 0.0
    %110 = vmatpush1.msra.mxu0 %v72
    %111 = vmatprep.subr.mxu0 0.0
    %112 = vmatpush1.msra.mxu0 %v71
    %113 = vmatprep.subr.mxu0 0.0
    %114 = vmatpush1.msra.mxu0 %v70
    %115 = vmatprep.subr.mxu0 0.0
    %116 = vmatpush1.msra.mxu0 %v69
    %117 = vmatprep.subr.mxu0 0.0
    %118 = vmatpush2.msra.mxu0 0.0
    %119 = vmatprep.subr.mxu0 0.0
    %120 = vmatpush2.msra.mxu0 0.0
    %121 = vmatprep.subr.mxu0 0.0
    %122 = vmatpush2.msra.mxu0 0.0
    %123 = vmatprep.subr.mxu0 0.0
    %124 = vmatpush2.msra.mxu0 0.0
    %125 = vmatprep.subr.mxu0 0.0
    %126 = vmatpush2.msra.mxu0 0.0
    %127 = vmatprep.subr.mxu0 0.0
    %128 = vmatpush2.msra.mxu0 0.0
    %129 = vmatprep.subr.mxu0 0.0
    %130 = vmatpush2.msra.mxu0 0.0
    %131 = vmatprep.subr.mxu0 0.0
    %132 = vmatpush2.msra.mxu0 0.0
    %133 = vmatprep.subr.mxu0 0.0
    %134 = vmatpush2.msra.mxu0 0.0
    %135 = vmatprep.subr.mxu0 0.0
    %136 = vmatpush2.msra.mxu0 0.0
    %137 = vmatprep.subr.mxu0 0.0
    %138 = vmatpush2.msra.mxu0 0.0
    %139 = vmatprep.subr.mxu0 0.0
    %140 = vmatpush2.msra.mxu0 0.0
    %141 = vmatprep.subr.mxu0 0.0
    %142 = vmatpush2.msra.mxu0 0.0
    %143 = vmatprep.subr.mxu0 0.0
    %144 = vmatpush2.msra.mxu0 0.0
    %145 = vmatprep.subr.mxu0 0.0
    %146 = vmatpush2.msra.mxu0 0.0
    %147 = vmatprep.subr.mxu0 0.0
    %148 = vmatpush2.msra.mxu0 0.0
    %149 = vmatprep.mubr.f32.mxu0 0.0
    %150 = vmatmul.mubr.f32.gmra.mxu0 %v67
    %v151 = vpop.f32.mrf.mxu0
    %v152 = vadd.f32 %v66, %v151
    %v153 = vpop.f32.mrf.mxu0
    %154 = vdwg.mxu0
    %s155 = sld [smem:[#allocation2]]
    %s156 = smax.f32 %s155, 0.0
    %s157 = ssub.f32 0.0, %s156
    %v158 = vstv %s157
    %v159 = vmax.f32 %v158, %v152
    %v160 = vstv %s156
    %v161 = vmin.f32 %v160, %v159
    %v162 = vsub.f32 %v152, %v161
    %s163 = scalar_lea.vmem [#allocation10], 8
    %164 = vst [vmem:[%s163] sm:$0xff] %v162
    %v165 = vld [vmem:[#allocation7] sm:$0xff]
    %v166 = vld [vmem:[#allocation7 + $0x8] sm:$0xff]
    %v167 = vld [vmem:[#allocation7 + $0x10] sm:$0xff]
    %v168 = vld [vmem:[#allocation7 + $0x18] sm:$0xff]
    %v169 = vld [vmem:[#allocation7 + $0x20] sm:$0xff]
    %v170 = vld [vmem:[#allocation7 + $0x28] sm:$0xff]
    %v171 = vld [vmem:[#allocation7 + $0x30] sm:$0xff]
    %v172 = vld [vmem:[#allocation7 + $0x38] sm:$0xff]
    %v173 = vld [vmem:[#allocation7 + $0x40] sm:$0xff]
    %v174 = vld [vmem:[#allocation7 + $0x48] sm:$0xff]
    %v175 = vld [vmem:[#allocation7 + $0x50] sm:$0xff]
    %v176 = vld [vmem:[#allocation7 + $0x58] sm:$0xff]
    %v177 = vld [vmem:[#allocation7 + $0x60] sm:$0xff]
    %v178 = vld [vmem:[#allocation7 + $0x68] sm:$0xff]
    %v179 = vld [vmem:[#allocation7 + $0x70] sm:$0xff]
    %v180 = vld [vmem:[#allocation7 + $0x78] sm:$0xff]
    %181 = vmatprep.subr.mxu0 0.0
    %182 = vmatpush1.msra.mxu0 %v180
    %183 = vmatprep.subr.mxu0 0.0
    %184 = vmatpush1.msra.mxu0 %v179
    %185 = vmatprep.subr.mxu0 0.0
    %186 = vmatpush1.msra.mxu0 %v178
    %187 = vmatprep.subr.mxu0 0.0
    %188 = vmatpush1.msra.mxu0 %v177
    %189 = vmatprep.subr.mxu0 0.0
    %190 = vmatpush1.msra.mxu0 %v176
    %191 = vmatprep.subr.mxu0 0.0
    %192 = vmatpush1.msra.mxu0 %v175
    %193 = vmatprep.subr.mxu0 0.0
    %194 = vmatpush1.msra.mxu0 %v174
    %195 = vmatprep.subr.mxu0 0.0
    %196 = vmatpush1.msra.mxu0 %v173
    %197 = vmatprep.subr.mxu0 0.0
    %198 = vmatpush1.msra.mxu0 %v172
    %199 = vmatprep.subr.mxu0 0.0
    %200 = vmatpush1.msra.mxu0 %v171
    %201 = vmatprep.subr.mxu0 0.0
    %202 = vmatpush1.msra.mxu0 %v170
    %203 = vmatprep.subr.mxu0 0.0
    %204 = vmatpush1.msra.mxu0 %v169
    %205 = vmatprep.subr.mxu0 0.0
    %206 = vmatpush1.msra.mxu0 %v168
    %207 = vmatprep.subr.mxu0 0.0
    %208 = vmatpush1.msra.mxu0 %v167
    %209 = vmatprep.subr.mxu0 0.0
    %210 = vmatpush1.msra.mxu0 %v166
    %211 = vmatprep.subr.mxu0 0.0
    %212 = vmatpush1.msra.mxu0 %v165
    %213 = vmatprep.subr.mxu0 0.0
    %214 = vmatpush2.msra.mxu0 0.0
    %215 = vmatprep.subr.mxu0 0.0
    %216 = vmatpush2.msra.mxu0 0.0
    %217 = vmatprep.subr.mxu0 0.0
    %218 = vmatpush2.msra.mxu0 0.0
    %219 = vmatprep.subr.mxu0 0.0
    %220 = vmatpush2.msra.mxu0 0.0
    %221 = vmatprep.subr.mxu0 0.0
    %222 = vmatpush2.msra.mxu0 0.0
    %223 = vmatprep.subr.mxu0 0.0
    %224 = vmatpush2.msra.mxu0 0.0
    %225 = vmatprep.subr.mxu0 0.0
    %226 = vmatpush2.msra.mxu0 0.0
    %227 = vmatprep.subr.mxu0 0.0
    %228 = vmatpush2.msra.mxu0 0.0
    %229 = vmatprep.subr.mxu0 0.0
    %230 = vmatpush2.msra.mxu0 0.0
    %231 = vmatprep.subr.mxu0 0.0
    %232 = vmatpush2.msra.mxu0 0.0
    %233 = vmatprep.subr.mxu0 0.0
    %234 = vmatpush2.msra.mxu0 0.0
    %235 = vmatprep.subr.mxu0 0.0
    %236 = vmatpush2.msra.mxu0 0.0
    %237 = vmatprep.subr.mxu0 0.0
    %238 = vmatpush2.msra.mxu0 0.0
    %239 = vmatprep.subr.mxu0 0.0
    %240 = vmatpush2.msra.mxu0 0.0
    %241 = vmatprep.subr.mxu0 0.0
    %242 = vmatpush2.msra.mxu0 0.0
    %243 = vmatprep.subr.mxu0 0.0
    %244 = vmatpush2.msra.mxu0 0.0
    %245 = vmatprep.mubr.f32.mxu0 0.0
    %246 = vmatmul.mubr.f32.gmra.mxu0 %v162
    %v247 = vpop.f32.mrf.mxu0
    %v248 = vadd.f32 %v66, %v247
    %v249 = vpop.f32.mrf.mxu0
    %250 = vdwg.mxu0
    %s251 = sld [smem:[#allocation2 + $0x1]]
    %s252 = smax.f32 %s251, 0.0
    %s253 = ssub.f32 0.0, %s252
    %v254 = vstv %s253
    %v255 = vmax.f32 %v254, %v248
    %v256 = vstv %s252
    %v257 = vmin.f32 %v256, %v255
    %v258 = vsub.f32 %v248, %v257
    %s259 = scalar_lea.vmem [#allocation10], 16
    %260 = vst [vmem:[%s259] sm:$0xff] %v258
    %v261 = vld [vmem:[#allocation7] sm:$0xff]
    %v262 = vld [vmem:[#allocation7 + $0x8] sm:$0xff]
    %v263 = vld [vmem:[#allocation7 + $0x10] sm:$0xff]
    %v264 = vld [vmem:[#allocation7 + $0x18] sm:$0xff]
    %v265 = vld [vmem:[#allocation7 + $0x20] sm:$0xff]
    %v266 = vld [vmem:[#allocation7 + $0x28] sm:$0xff]
    %v267 = vld [vmem:[#allocation7 + $0x30] sm:$0xff]
    %v268 = vld [vmem:[#allocation7 + $0x38] sm:$0xff]
    %v269 = vld [vmem:[#allocation7 + $0x40] sm:$0xff]
    %v270 = vld [vmem:[#allocation7 + $0x48] sm:$0xff]
    %v271 = vld [vmem:[#allocation7 + $0x50] sm:$0xff]
    %v272 = vld [vmem:[#allocation7 + $0x58] sm:$0xff]
    %v273 = vld [vmem:[#allocation7 + $0x60] sm:$0xff]
    %v274 = vld [vmem:[#allocation7 + $0x68] sm:$0xff]
    %v275 = vld [vmem:[#allocation7 + $0x70] sm:$0xff]
    %v276 = vld [vmem:[#allocation7 + $0x78] sm:$0xff]
    %277 = vmatprep.subr.mxu0 0.0
    %278 = vmatpush1.msra.mxu0 %v276
    %279 = vmatprep.subr.mxu0 0.0
    %280 = vmatpush1.msra.mxu0 %v275
    %281 = vmatprep.subr.mxu0 0.0
    %282 = vmatpush1.msra.mxu0 %v274
    %283 = vmatprep.subr.mxu0 0.0
    %284 = vmatpush1.msra.mxu0 %v273
    %285 = vmatprep.subr.mxu0 0.0
    %286 = vmatpush1.msra.mxu0 %v272
    %287 = vmatprep.subr.mxu0 0.0
    %288 = vmatpush1.msra.mxu0 %v271
    %289 = vmatprep.subr.mxu0 0.0
    %290 = vmatpush1.msra.mxu0 %v270
    %291 = vmatprep.subr.mxu0 0.0
    %292 = vmatpush1.msra.mxu0 %v269
    %293 = vmatprep.subr.mxu0 0.0
    %294 = vmatpush1.msra.mxu0 %v268
    %295 = vmatprep.subr.mxu0 0.0
    %296 = vmatpush1.msra.mxu0 %v267
    %297 = vmatprep.subr.mxu0 0.0
    %298 = vmatpush1.msra.mxu0 %v266
    %299 = vmatprep.subr.mxu0 0.0
    %300 = vmatpush1.msra.mxu0 %v265
    %301 = vmatprep.subr.mxu0 0.0
    %302 = vmatpush1.msra.mxu0 %v264
    %303 = vmatprep.subr.mxu0 0.0
    %304 = vmatpush1.msra.mxu0 %v263
    %305 = vmatprep.subr.mxu0 0.0
    %306 = vmatpush1.msra.mxu0 %v262
    %307 = vmatprep.subr.mxu0 0.0
    %308 = vmatpush1.msra.mxu0 %v261
    %309 = vmatprep.subr.mxu0 0.0
    %310 = vmatpush2.msra.mxu0 0.0
    %311 = vmatprep.subr.mxu0 0.0
    %312 = vmatpush2.msra.mxu0 0.0
    %313 = vmatprep.subr.mxu0 0.0
    %314 = vmatpush2.msra.mxu0 0.0
    %315 = vmatprep.subr.mxu0 0.0
    %316 = vmatpush2.msra.mxu0 0.0
    %317 = vmatprep.subr.mxu0 0.0
    %318 = vmatpush2.msra.mxu0 0.0
    %319 = vmatprep.subr.mxu0 0.0
    %320 = vmatpush2.msra.mxu0 0.0
    %321 = vmatprep.subr.mxu0 0.0
    %322 = vmatpush2.msra.mxu0 0.0
    %323 = vmatprep.subr.mxu0 0.0
    %324 = vmatpush2.msra.mxu0 0.0
    %325 = vmatprep.subr.mxu0 0.0
    %326 = vmatpush2.msra.mxu0 0.0
    %327 = vmatprep.subr.mxu0 0.0
    %328 = vmatpush2.msra.mxu0 0.0
    %329 = vmatprep.subr.mxu0 0.0
    %330 = vmatpush2.msra.mxu0 0.0
    %331 = vmatprep.subr.mxu0 0.0
    %332 = vmatpush2.msra.mxu0 0.0
    %333 = vmatprep.subr.mxu0 0.0
    %334 = vmatpush2.msra.mxu0 0.0
    %335 = vmatprep.subr.mxu0 0.0
    %336 = vmatpush2.msra.mxu0 0.0
    %337 = vmatprep.subr.mxu0 0.0
    %338 = vmatpush2.msra.mxu0 0.0
    %339 = vmatprep.subr.mxu0 0.0
    %340 = vmatpush2.msra.mxu0 0.0
    %341 = vmatprep.mubr.f32.mxu0 0.0
    %342 = vmatmul.mubr.f32.gmra.mxu0 %v258
    %v343 = vpop.f32.mrf.mxu0
    %v344 = vadd.f32 %v66, %v343
    %v345 = vpop.f32.mrf.mxu0
    %346 = vdwg.mxu0
    %s347 = sld [smem:[#allocation2 + $0x2]]
    %s348 = smax.f32 %s347, 0.0
    %s349 = ssub.f32 0.0, %s348
    %v350 = vstv %s349
    %v351 = vmax.f32 %v350, %v344
    %v352 = vstv %s348
    %v353 = vmin.f32 %v352, %v351
    %v354 = vsub.f32 %v344, %v353
    %s355 = scalar_lea.vmem [#allocation10], 24
    %356 = vst [vmem:[%s355] sm:$0xff] %v354
    %v357 = vld [vmem:[#allocation7] sm:$0xff]
    %v358 = vld [vmem:[#allocation7 + $0x8] sm:$0xff]
    %v359 = vld [vmem:[#allocation7 + $0x10] sm:$0xff]
    %v360 = vld [vmem:[#allocation7 + $0x18] sm:$0xff]
    %v361 = vld [vmem:[#allocation7 + $0x20] sm:$0xff]
    %v362 = vld [vmem:[#allocation7 + $0x28] sm:$0xff]
    %v363 = vld [vmem:[#allocation7 + $0x30] sm:$0xff]
    %v364 = vld [vmem:[#allocation7 + $0x38] sm:$0xff]
    %v365 = vld [vmem:[#allocation7 + $0x40] sm:$0xff]
    %v366 = vld [vmem:[#allocation7 + $0x48] sm:$0xff]
    %v367 = vld [vmem:[#allocation7 + $0x50] sm:$0xff]
    %v368 = vld [vmem:[#allocation7 + $0x58] sm:$0xff]
    %v369 = vld [vmem:[#allocation7 + $0x60] sm:$0xff]
    %v370 = vld [vmem:[#allocation7 + $0x68] sm:$0xff]
    %v371 = vld [vmem:[#allocation7 + $0x70] sm:$0xff]
    %v372 = vld [vmem:[#allocation7 + $0x78] sm:$0xff]
    %373 = vmatprep.subr.mxu0 0.0
    %374 = vmatpush1.msra.mxu0 %v372
    %375 = vmatprep.subr.mxu0 0.0
    %376 = vmatpush1.msra.mxu0 %v371
    %377 = vmatprep.subr.mxu0 0.0
    %378 = vmatpush1.msra.mxu0 %v370
    %379 = vmatprep.subr.mxu0 0.0
    %380 = vmatpush1.msra.mxu0 %v369
    %381 = vmatprep.subr.mxu0 0.0
    %382 = vmatpush1.msra.mxu0 %v368
    %383 = vmatprep.subr.mxu0 0.0
    %384 = vmatpush1.msra.mxu0 %v367
    %385 = vmatprep.subr.mxu0 0.0
    %386 = vmatpush1.msra.mxu0 %v366
    %387 = vmatprep.subr.mxu0 0.0
    %388 = vmatpush1.msra.mxu0 %v365
    %389 = vmatprep.subr.mxu0 0.0
    %390 = vmatpush1.msra.mxu0 %v364
    %391 = vmatprep.subr.mxu0 0.0
    %392 = vmatpush1.msra.mxu0 %v363
    %393 = vmatprep.subr.mxu0 0.0
    %394 = vmatpush1.msra.mxu0 %v362
    %395 = vmatprep.subr.mxu0 0.0
    %396 = vmatpush1.msra.mxu0 %v361
    %397 = vmatprep.subr.mxu0 0.0
    %398 = vmatpush1.msra.mxu0 %v360
    %399 = vmatprep.subr.mxu0 0.0
    %400 = vmatpush1.msra.mxu0 %v359
    %401 = vmatprep.subr.mxu0 0.0
    %402 = vmatpush1.msra.mxu0 %v358
    %403 = vmatprep.subr.mxu0 0.0
    %404 = vmatpush1.msra.mxu0 %v357
    %405 = vmatprep.subr.mxu0 0.0
    %406 = vmatpush2.msra.mxu0 0.0
    %407 = vmatprep.subr.mxu0 0.0
    %408 = vmatpush2.msra.mxu0 0.0
    %409 = vmatprep.subr.mxu0 0.0
    %410 = vmatpush2.msra.mxu0 0.0
    %411 = vmatprep.subr.mxu0 0.0
    %412 = vmatpush2.msra.mxu0 0.0
    %413 = vmatprep.subr.mxu0 0.0
    %414 = vmatpush2.msra.mxu0 0.0
    %415 = vmatprep.subr.mxu0 0.0
    %416 = vmatpush2.msra.mxu0 0.0
    %417 = vmatprep.subr.mxu0 0.0
    %418 = vmatpush2.msra.mxu0 0.0
    %419 = vmatprep.subr.mxu0 0.0
    %420 = vmatpush2.msra.mxu0 0.0
    %421 = vmatprep.subr.mxu0 0.0
    %422 = vmatpush2.msra.mxu0 0.0
    %423 = vmatprep.subr.mxu0 0.0
    %424 = vmatpush2.msra.mxu0 0.0
    %425 = vmatprep.subr.mxu0 0.0
    %426 = vmatpush2.msra.mxu0 0.0
    %427 = vmatprep.subr.mxu0 0.0
    %428 = vmatpush2.msra.mxu0 0.0
    %429 = vmatprep.subr.mxu0 0.0
    %430 = vmatpush2.msra.mxu0 0.0
    %431 = vmatprep.subr.mxu0 0.0
    %432 = vmatpush2.msra.mxu0 0.0
    %433 = vmatprep.subr.mxu0 0.0
    %434 = vmatpush2.msra.mxu0 0.0
    %435 = vmatprep.subr.mxu0 0.0
    %436 = vmatpush2.msra.mxu0 0.0
    %437 = vmatprep.mubr.f32.mxu0 0.0
    %438 = vmatmul.mubr.f32.gmra.mxu0 %v354
    %v439 = vpop.f32.mrf.mxu0
    %v440 = vadd.f32 %v66, %v439
    %v441 = vpop.f32.mrf.mxu0
    %442 = vdwg.mxu0
    %s443 = sld [smem:[#allocation2 + $0x3]]
    %s444 = smax.f32 %s443, 0.0
    %s445 = ssub.f32 0.0, %s444
    %v446 = vstv %s445
    %v447 = vmax.f32 %v446, %v440
    %v448 = vstv %s444
    %v449 = vmin.f32 %v448, %v447
    %v450 = vsub.f32 %v440, %v449
    %s451 = scalar_lea.vmem [#allocation10], 32
    %452 = vst [vmem:[%s451] sm:$0xff] %v450
    %v453 = vld [vmem:[#allocation7] sm:$0xff]
    %v454 = vld [vmem:[#allocation7 + $0x8] sm:$0xff]
    %v455 = vld [vmem:[#allocation7 + $0x10] sm:$0xff]
    %v456 = vld [vmem:[#allocation7 + $0x18] sm:$0xff]
    %v457 = vld [vmem:[#allocation7 + $0x20] sm:$0xff]
    %v458 = vld [vmem:[#allocation7 + $0x28] sm:$0xff]
    %v459 = vld [vmem:[#allocation7 + $0x30] sm:$0xff]
    %v460 = vld [vmem:[#allocation7 + $0x38] sm:$0xff]
    %v461 = vld [vmem:[#allocation7 + $0x40] sm:$0xff]
    %v462 = vld [vmem:[#allocation7 + $0x48] sm:$0xff]
    %v463 = vld [vmem:[#allocation7 + $0x50] sm:$0xff]
    %v464 = vld [vmem:[#allocation7 + $0x58] sm:$0xff]
    %v465 = vld [vmem:[#allocation7 + $0x60] sm:$0xff]
    %v466 = vld [vmem:[#allocation7 + $0x68] sm:$0xff]
    %v467 = vld [vmem:[#allocation7 + $0x70] sm:$0xff]
    %v468 = vld [vmem:[#allocation7 + $0x78] sm:$0xff]
    %469 = vmatprep.subr.mxu0 0.0
    %470 = vmatpush1.msra.mxu0 %v468
    %471 = vmatprep.subr.mxu0 0.0
    %472 = vmatpush1.msra.mxu0 %v467
    %473 = vmatprep.subr.mxu0 0.0
    %474 = vmatpush1.msra.mxu0 %v466
    %475 = vmatprep.subr.mxu0 0.0
    %476 = vmatpush1.msra.mxu0 %v465
    %477 = vmatprep.subr.mxu0 0.0
    %478 = vmatpush1.msra.mxu0 %v464
    %479 = vmatprep.subr.mxu0 0.0
    %480 = vmatpush1.msra.mxu0 %v463
    %481 = vmatprep.subr.mxu0 0.0
    %482 = vmatpush1.msra.mxu0 %v462
    %483 = vmatprep.subr.mxu0 0.0
    %484 = vmatpush1.msra.mxu0 %v461
    %485 = vmatprep.subr.mxu0 0.0
    %486 = vmatpush1.msra.mxu0 %v460
    %487 = vmatprep.subr.mxu0 0.0
    %488 = vmatpush1.msra.mxu0 %v459
    %489 = vmatprep.subr.mxu0 0.0
    %490 = vmatpush1.msra.mxu0 %v458
    %491 = vmatprep.subr.mxu0 0.0
    %492 = vmatpush1.msra.mxu0 %v457
    %493 = vmatprep.subr.mxu0 0.0
    %494 = vmatpush1.msra.mxu0 %v456
    %495 = vmatprep.subr.mxu0 0.0
    %496 = vmatpush1.msra.mxu0 %v455
    %497 = vmatprep.subr.mxu0 0.0
    %498 = vmatpush1.msra.mxu0 %v454
    %499 = vmatprep.subr.mxu0 0.0
    %500 = vmatpush1.msra.mxu0 %v453
    %501 = vmatprep.subr.mxu0 0.0
    %502 = vmatpush2.msra.mxu0 0.0
    %503 = vmatprep.subr.mxu0 0.0
    %504 = vmatpush2.msra.mxu0 0.0
    %505 = vmatprep.subr.mxu0 0.0
    %506 = vmatpush2.msra.mxu0 0.0
    %507 = vmatprep.subr.mxu0 0.0
    %508 = vmatpush2.msra.mxu0 0.0
    %509 = vmatprep.subr.mxu0 0.0
    %510 = vmatpush2.msra.mxu0 0.0
    %511 = vmatprep.subr.mxu0 0.0
    %512 = vmatpush2.msra.mxu0 0.0
    %513 = vmatprep.subr.mxu0 0.0
    %514 = vmatpush2.msra.mxu0 0.0
    %515 = vmatprep.subr.mxu0 0.0
    %516 = vmatpush2.msra.mxu0 0.0
    %517 = vmatprep.subr.mxu0 0.0
    %518 = vmatpush2.msra.mxu0 0.0
    %519 = vmatprep.subr.mxu0 0.0
    %520 = vmatpush2.msra.mxu0 0.0
    %521 = vmatprep.subr.mxu0 0.0
    %522 = vmatpush2.msra.mxu0 0.0
    %523 = vmatprep.subr.mxu0 0.0
    %524 = vmatpush2.msra.mxu0 0.0
    %525 = vmatprep.subr.mxu0 0.0
    %526 = vmatpush2.msra.mxu0 0.0
    %527 = vmatprep.subr.mxu0 0.0
    %528 = vmatpush2.msra.mxu0 0.0
    %529 = vmatprep.subr.mxu0 0.0
    %530 = vmatpush2.msra.mxu0 0.0
    %531 = vmatprep.subr.mxu0 0.0
    %532 = vmatpush2.msra.mxu0 0.0
    %533 = vmatprep.mubr.f32.mxu0 0.0
    %534 = vmatmul.mubr.f32.gmra.mxu0 %v450
    %v535 = vpop.f32.mrf.mxu0
    %v536 = vadd.f32 %v66, %v535
    %v537 = vpop.f32.mrf.mxu0
    %538 = vdwg.mxu0
    %s539 = sld [smem:[#allocation2 + $0x4]]
    %s540 = smax.f32 %s539, 0.0
    %s541 = ssub.f32 0.0, %s540
    %v542 = vstv %s541
    %v543 = vmax.f32 %v542, %v536
    %v544 = vstv %s540
    %v545 = vmin.f32 %v544, %v543
    %v546 = vsub.f32 %v536, %v545
    %s547 = scalar_lea.vmem [#allocation10], 40
    %548 = vst [vmem:[%s547] sm:$0xff] %v546
    // Predicated region
    $region34: #{tpu_custom_call.1} parent=1 // pred_check
      _
    $region35: #{tpu_custom_call.1} parent=1 // pred_check_branch
      %550 = sbr.rel (0) target = $region37
    $region36: #{tpu_custom_call.1} parent=1 // pred_region
      %s552 = ssub.s32 768, 768
      %553 = vsyncadd [#allocation4], %s552
      %s554 = sshll.u32 [#allocation10], 4
      %s555 = int_to_ptr.vmem [resolvable:$true] %s554
      %560 = dma.vmem_to_hbm [thread:$0]  %s555, 768, %s4, [#allocation4], 128, 128, 8
    $region37: #{tpu_custom_call.1} parent=1 // pred_fallthru
      _
    // Predicated region
    $region38: #{tpu_custom_call.1} parent=1 // pred_check
      _
    $region39: #{tpu_custom_call.1} parent=1 // pred_check_branch
      %562 = sbr.rel (0) target = $region41
    $region40: #{tpu_custom_call.1} parent=1 // pred_region
      %563 = dma.done [#allocation4], 768
    $region41: #{tpu_custom_call.1} parent=1 // pred_fallthru
      _
    %564 = vsyncpa [#allocation3], 1
    %565 = vsyncpa [#allocation8], 1
    %566 = vsyncpa [#allocation4], 1
    %567 = vsyncpa [#allocation5], 1

</llo_original>
